<compile_context>
chip_gen: v6e
topology: v6e:2x2x1
jax: 0.10.0
libtpu: 0.0.40
codegen_flags: <defaults>
</compile_context>

<pallas_src>
import math

import numpy as np
import jax
import jax.numpy as jnp
from jax.experimental import pallas as pl
from jax.experimental.pallas import tpu as pltpu

_LANE = 128


# ---------------------------------------------------------------------------
# Module __init__: sinusoidal buffer, built directly in the model dtype.
# ---------------------------------------------------------------------------
def _build_pe(d_model, max_len=5000, dtype=jnp.float32):
    position = jnp.arange(0, max_len, dtype=jnp.float32)[:, None]           # (max_len, 1)
    div_term = jnp.exp(
        jnp.arange(0, d_model, 2, dtype=jnp.float32) * (-math.log(10000.0) / d_model)
    )                                                                        # (ceil(D/2),)
    pe = jnp.zeros((max_len, d_model), dtype=jnp.float32)
    pe = pe.at[:, 0::2].set(jnp.sin(position * div_term))
    # Guard odd d_model: pe[:, 1::2] has floor(D/2) columns.
    pe = pe.at[:, 1::2].set(jnp.cos(position * div_term)[:, : d_model // 2])
    return pe.astype(dtype)


# ---------------------------------------------------------------------------
# Kernel: pure VPU add of a pe tile onto an x tile.  pe broadcasts over the
# batch (or size-1 leading) dim; any dtype mismatch is cast per-tile only.
# ---------------------------------------------------------------------------
def _pe_add_kernel(x_ref, pe_ref, o_ref):
    o_ref[...] = x_ref[...] + pe_ref[...].astype(o_ref.dtype)


def _sublane(dtype):
    # Packed-sublane granularity: 8 rows for 4-byte, 16 for 2-byte, 32 for 1-byte.
    return {4: 8, 2: 16, 1: 32}.get(np.dtype(dtype).itemsize, 8)


def _gen_params():
    """Per-generation block target / VMEM limit (v7x: 64 MiB VMEM, ~3.2 TB/s HBM)."""
    target, vmem_limit = 4 * 1024 * 1024, 48 * 1024 * 1024
    try:
        kind = jax.devices()[0].device_kind.lower()
    except Exception:
        kind = ""
    if "v7" in kind or "tpu7" in kind:
        # Bigger blocks amortize the ~0.35us/step overhead; 6 double-buffered
        # 6 MiB arrays = 36 MiB, leaves headroom under 64 MiB physical VMEM.
        target, vmem_limit = 6 * 1024 * 1024, 56 * 1024 * 1024
    return target, vmem_limit


def positional_encoding_forward(x, pe_full, *, donate_x=False, block_bytes=None):
    """out = x + pe_full[:S] (broadcast over batch). x: (B, S, D), pe_full: (max_len, D).

    donate_x: set True only when x is dead after this op (adds input_output_aliases).
    block_bytes: override the auto block-size target (mainly for testing).
    """
    B, S, D = x.shape
    max_len, d_pe = pe_full.shape
    assert d_pe == D, f"pe d_model {d_pe} != x d_model {D}"
    assert S <= max_len, f"sequence length {S} exceeds max_len {max_len}"

    itemsize = np.dtype(x.dtype).itemsize
    sub = max(_sublane(x.dtype), _sublane(pe_full.dtype))
    target, vmem_limit = _gen_params()
    if block_bytes is not None:
        target = block_bytes
    aliases = {0: 0} if donate_x else {}

    if D % _LANE == 0:
        row_bytes = D * itemsize
        target_rows = max(sub, (target // row_bytes) // sub * sub)
        seq_tiled = S >= target_rows or (B == 1 and S >= 2 * sub)

        if seq_tiled:
            # ---- sequence-tiled: blocks (1, ts, D); pe windowed from pe_full ----
            ts = max(sub, (min(target_rows, S) // sub) * sub)
            if B == 1 and pl.cdiv(S, ts) == 1 and S >= 2 * sub:
                # Ensure >=2 grid blocks so both v7x TensorCores get work.
                ts = max(sub, ((S // 2 + sub - 1) // sub) * sub)
            grid = (pl.cdiv(S, ts), B)      # batch innermost -> pe tile DMA reused
            return pl.pallas_call(
                _pe_add_kernel,
                out_shape=jax.ShapeDtypeStruct((B, S, D), x.dtype),
                grid_spec=pl.GridSpec(
                    grid=grid,
                    in_specs=[
                        pl.BlockSpec((1, ts, D), lambda si, bi: (bi, si, 0)),
                        pl.BlockSpec((ts, D), lambda si, bi: (si, 0)),
                    ],
                    out_specs=pl.BlockSpec((1, ts, D), lambda si, bi: (bi, si, 0)),
                ),
                input_output_aliases=aliases,
                compiler_params=pltpu.CompilerParams(
                    dimension_semantics=("parallel", "parallel"),
                    vmem_limit_bytes=vmem_limit,
                ),
            )(x, pe_full)

        # ---- batch-tiled (small S): blocks (TB, S, D) + one shared (S, D) pe tile ----
        tb = max(1, min(B, target_rows // max(S, 1)))
        if pl.cdiv(B, tb) == 1 and B >= 2:
            tb = (B + 1) // 2               # >=2 blocks so both v7x cores get work
        grid = (pl.cdiv(B, tb),)
        # pe block must be sublane-multiple or full-extent: window pe_full directly
        # when legal, otherwise slice the S rows once (small vs. 2*B*S*D traffic).
        pe_oper = pe_full if S % sub == 0 else pe_full[:S]
        return pl.pallas_call(
            _pe_add_kernel,
            out_shape=jax.ShapeDtypeStruct((B, S, D), x.dtype),
            grid_spec=pl.GridSpec(
                grid=grid,
                in_specs=[
                    pl.BlockSpec((tb, S, D), lambda bi: (bi, 0, 0)),
                    pl.BlockSpec((S, D), lambda bi: (0, 0)),
                ],
                out_specs=pl.BlockSpec((tb, S, D), lambda bi: (bi, 0, 0)),
            ),
            input_output_aliases=aliases,
            compiler_params=pltpu.CompilerParams(
                dimension_semantics=("parallel",),
                vmem_limit_bytes=vmem_limit,
            ),
        )(x, pe_oper)

    # ---- fallback (D not a multiple of 128): fold (S, D) onto the lane axis ----
    # Lane-dense stores; pe is sliced+reshaped once per call (S*D elements, small
    # next to the 2*B*S*D kernel traffic).  Blocks (tb, tl): tb multiple of 8 or
    # full extent, tl multiple of 128 or full extent -- no sublane-1 blocks.
    L = S * D
    x2 = x.reshape(B, L)
    pe2 = pe_full[:S, :].reshape(1, L)

    eff_b = B if B <= 8 else 8
    tl_cap = max(_LANE, (target // (eff_b * itemsize)) // _LANE * _LANE)
    tl = L if L <= tl_cap else tl_cap
    tb_fit = max(1, target // (tl * itemsize))
    tb = B if tb_fit >= B else max(8, (tb_fit // 8) * 8)
    grid = (pl.cdiv(L, tl), pl.cdiv(B, tb))  # batch innermost -> pe tile DMA reused

    out = pl.pallas_call(
        _pe_add_kernel,
        out_shape=jax.ShapeDtypeStruct((B, L), x.dtype),
        grid_spec=pl.GridSpec(
            grid=grid,
            in_specs=[
                pl.BlockSpec((tb, tl), lambda li, bi: (bi, li)),
                pl.BlockSpec((1, tl), lambda li, bi: (0, li)),
            ],
            out_specs=pl.BlockSpec((tb, tl), lambda li, bi: (bi, li)),
        ),
        input_output_aliases=aliases,
        compiler_params=pltpu.CompilerParams(
            dimension_semantics=("parallel", "parallel"),
            vmem_limit_bytes=vmem_limit,
        ),
    )(x2, pe2)
    return out.reshape(B, S, D)


class PositionalEncoding:
    """Mirrors the PyTorch module: buffer built once (in the model dtype) at init."""

    def __init__(self, d_model, max_len=5000, dtype=jnp.float32):
        self.pe = _build_pe(d_model, max_len, dtype)

    def __call__(self, x, *, donate_x=False):
        return positional_encoding_forward(x, self.pe, donate_x=donate_x)


if __name__ == "__main__":
    keys = jax.random.split(jax.random.PRNGKey(0), 5)

    def check(out, x, pe, tag):
        ref = x + pe[None, : x.shape[1], :]
        assert out.shape == x.shape, tag
        assert jnp.allclose(out, ref, atol=1e-6, rtol=1e-6), f"mismatch vs reference ({tag})"

    # Case 1: module-test scale, small d_model -> folded lane-axis fallback path.
    B, S, D = 2, 8, 32
    mod = PositionalEncoding(D, max_len=64)
    x = jax.random.normal(keys[0], (B, S, D), dtype=jnp.float32)
    out = jax.block_until_ready(mod(x))
    check(out, x, mod.pe, "folded small-D path")

    # Case 2: D multiple of 128, small S -> batch-tiled main path (+ donated x).
    B, S, D = 2, 16, 128
    mod2 = PositionalEncoding(D, max_len=64)
    x = jax.random.normal(keys[1], (B, S, D), dtype=jnp.float32)
    ref2 = x + mod2.pe[None, :S, :]
    out = jax.block_until_ready(mod2(x, donate_x=True))
    assert out.shape == (B, S, D)
    assert jnp.allclose(out, ref2, atol=1e-6, rtol=1e-6), "mismatch (batch-tiled path)"

    # Case 3: sequence-tiled main path (block-size override so ts < S at test scale).
    B, S, D = 2, 64, 128
    pe3 = _build_pe(D, 128)
    x = jax.random.normal(keys[2], (B, S, D), dtype=jnp.float32)
    out = jax.block_until_ready(
        positional_encoding_forward(x, pe3, block_bytes=8 * 1024))
    check(out, x, pe3, "sequence-tiled path")

    # Case 4: S not a multiple of 8 -> batch-tiled path with full-extent pe[:S] tile.
    B, S, D = 4, 10, 128
    pe4 = _build_pe(D, 64)
    x = jax.random.normal(keys[3], (B, S, D), dtype=jnp.float32)
    out = jax.block_until_ready(positional_encoding_forward(x, pe4))
    check(out, x, pe4, "non-multiple-of-8 S path")

    # Case 5: B == 1 -> sequence split so both v7x TensorCores get a block.
    B, S, D = 1, 32, 128
    pe5 = _build_pe(D, 64)
    x = jax.random.normal(keys[4], (B, S, D), dtype=jnp.float32)
    out = jax.block_until_ready(positional_encoding_forward(x, pe5))
    check(out, x, pe5, "B=1 split path")

    print("KERNEL_OK")
</pallas_src>

<mosaic_0001>
module attributes {stable_mosaic.version = 11 : i64} {
  func.func @_pe_add_kernel(%arg0: i32, %arg1: i32, %arg2: memref<2x256xf32, #tpu.memory_space<vmem>>, %arg3: memref<1x256xf32, #tpu.memory_space<vmem>>, %arg4: memref<2x256xf32, #tpu.memory_space<vmem>>) attributes {dimension_semantics = [#tpu.dimension_semantics<parallel>, #tpu.dimension_semantics<parallel>], iteration_bounds = array<i64: 1, 1>, scalar_prefetch = 0 : i64, scratch_operands = 0 : i64, tpu.core_type = #tpu.core_type<tc>, window_params = [{transform_indices = @transform_0, window_bounds = array<i64: 2, 256>}, {transform_indices = @transform_1, window_bounds = array<i64: 1, 256>}, {transform_indices = @transform_2, window_bounds = array<i64: 2, 256>}]} {
    %c0 = arith.constant 0 : index
    %c0_0 = arith.constant 0 : index
    %0 = vector.load %arg2[%c0, %c0_0] : memref<2x256xf32, #tpu.memory_space<vmem>>, vector<2x256xf32>
    %c0_1 = arith.constant 0 : index
    %c0_2 = arith.constant 0 : index
    %1 = vector.load %arg3[%c0_1, %c0_2] : memref<1x256xf32, #tpu.memory_space<vmem>>, vector<1x256xf32>
    %2 = vector.broadcast %1 : vector<1x256xf32> to vector<2x256xf32>
    %3 = arith.addf %0, %2 : vector<2x256xf32>
    %c0_3 = arith.constant 0 : index
    %c0_4 = arith.constant 0 : index
    %4 = vector.load %arg4[%c0_3, %c0_4] : memref<2x256xf32, #tpu.memory_space<vmem>>, vector<2x256xf32>
    tpu.vector_store %arg4[%c0_3, %c0_4], %3 {strides = array<i32>} : memref<2x256xf32, #tpu.memory_space<vmem>>, vector<2x256xf32>,
    return
  }
  func.func @transform_0(%arg0: i32, %arg1: i32) -> (i32, i32) {
    %c0_i32 = arith.constant 0 : i32
    return %arg1, %arg0 : i32, i32
  }
  func.func @transform_1(%arg0: i32, %arg1: i32) -> (i32, i32) {
    %c0_i32 = arith.constant 0 : i32
    %c0_i32_0 = arith.constant 0 : i32
    return %c0_i32, %arg0 : i32, i32
  }
  func.func @transform_2(%arg0: i32, %arg1: i32) -> (i32, i32) {
    %c0_i32 = arith.constant 0 : i32
    return %arg1, %arg0 : i32, i32
  }
}

</mosaic_0001>

<llo_original>
// kernel: tpu_custom_call.1
$region0: #{tpu_custom_call.1}
  #allocation0 [shape = 'u32[]', space=smem, size = 0x4, offset = 0x4, fixed_abs, tag = 'smem constant byte address 0x4 - core index']
  #allocation1 [shape = 'u32[144,128]{1,0:T(1,128)}', space=vmem, size = 0x12000, scoped, tag = 'internal scratch']
  %s0 = inlined_call_operand.hbm [shape: f32[2,256], index: 0, kind: input, shape index: {}]
  %s1 = inlined_call_operand.hbm [shape: f32[1,256], index: 1, kind: input, shape index: {}]
  %s2 = inlined_call_operand.hbm [shape: f32[2,256], index: 2, kind: output, shape index: {}]
  %s3 = sld [smem:[#allocation0]]
  $region26: #{tpu_custom_call.1} parent=0
    _
  %s5 = ssub.s32 1, %s3
  %s6 = scalar_select 0, %s5, %s3
  $region1: #{tpu_custom_call.1} parent=0
    #allocation2 [shape = 'u8[2048]{0}', space=vmem, size = 0x800, scoped, tag = 'input window, operand 0, single buffered']
    #allocation3 [shape = 's32[1]{0}', space=sflag, size = 0x4, scoped, tag = 'scoped memory for tpu_custom_call.1']
    #allocation4 [shape = 's32[1]{0}', space=sflag, size = 0x4, scoped, tag = 'scoped memory for tpu_custom_call.1']
    #allocation5 [shape = 'u8[1024]{0}', space=vmem, size = 0x400, scoped, tag = 'input window, operand 1, single buffered']
    #allocation6 [shape = 's32[1]{0}', space=sflag, size = 0x4, scoped, tag = 'scoped memory for tpu_custom_call.1']
    #allocation7 [shape = 'u8[2048]{0}', space=vmem, size = 0x800, scoped, tag = 'output window, operand 0, single buffered']
    %7 = vsyncpa [#allocation3], 0
    %8 = vsyncpa [#allocation6], 0
    %9 = vsyncpa [#allocation4], 0
    // Predicated region
    $region2: #{tpu_custom_call.1} parent=1 // pred_check
      _
    $region3: #{tpu_custom_call.1} parent=1 // pred_check_branch
      %11 = sbr.rel (0) target = $region5
    $region4: #{tpu_custom_call.1} parent=1 // pred_region
      %s13 = ssub.s32 64, 64
      %14 = vsyncadd [#allocation3], %s13
      %s16 = sshll.u32 [#allocation2], 4
      %s17 = int_to_ptr.vmem [resolvable:$true] %s16
      %19 = dma.hbm_to_vmem [thread:$0]  %s0, 64, %s17, [#allocation3]
    $region5: #{tpu_custom_call.1} parent=1 // pred_fallthru
      _
    // Predicated region
    $region6: #{tpu_custom_call.1} parent=1 // pred_check
      _
    $region7: #{tpu_custom_call.1} parent=1 // pred_check_branch
      %21 = sbr.rel (0) target = $region9
    $region8: #{tpu_custom_call.1} parent=1 // pred_region
      %s23 = ssub.s32 32, 32
      %24 = vsyncadd [#allocation6], %s23
      %s26 = sshll.u32 [#allocation5], 4
      %s27 = int_to_ptr.vmem [resolvable:$true] %s26
      %29 = dma.hbm_to_vmem [thread:$0]  %s1, 32, %s27, [#allocation6]
    $region9: #{tpu_custom_call.1} parent=1 // pred_fallthru
      _
    // Predicated region
    $region10: #{tpu_custom_call.1} parent=1 // pred_check
      _
    $region11: #{tpu_custom_call.1} parent=1 // pred_check_branch
      %31 = sbr.rel (0) target = $region13
    $region12: #{tpu_custom_call.1} parent=1 // pred_region
      %32 = dma.done [#allocation3], 64
    $region13: #{tpu_custom_call.1} parent=1 // pred_fallthru
      _
    // Predicated region
    $region14: #{tpu_custom_call.1} parent=1 // pred_check
      _
    $region15: #{tpu_custom_call.1} parent=1 // pred_check_branch
      %34 = sbr.rel (0) target = $region17
    $region16: #{tpu_custom_call.1} parent=1 // pred_region
      %35 = dma.done [#allocation6], 32
    $region17: #{tpu_custom_call.1} parent=1 // pred_fallthru
      _
    %v36 = vld [vmem:[#allocation2] sm:$0xf]
    %v37 = vld [vmem:[#allocation5] sm:$0x3]
    %v39 = vlaneseq
    %v40 = vshrl.u32 %v39, 7
    %v41 = vsub.s32 0, %v40
    %v42 = vrot.slane %v37, %v41
    %v43 = vlaneseq
    %v44 = vshrl.u32 %v43, 7
    %v45 = vsub.s32 1, %v44
    %v46 = vrot.slane %v37, %v45
    %v47 = vcombine.low %v42, %v46
    %v49 = vunpack.c.l.s4 1983009808
    %v50 = vunpack.c.0.s8 %v49
    %v51 = vlaneseq
    %v52 = vshrl.u32 %v51, 7
    %v53 = vsub.s32 %v50, %v52
    %v54 = vrot.slane %v47, %v53
    %v56 = vadd.f32 %v36, %v54
    %57 = vst [vmem:[#allocation7] sm:$0xf] %v56
    // Predicated region
    $region18: #{tpu_custom_call.1} parent=1 // pred_check
      _
    $region19: #{tpu_custom_call.1} parent=1 // pred_check_branch
      %59 = sbr.rel (0) target = $region21
    $region20: #{tpu_custom_call.1} parent=1 // pred_region
      %s61 = ssub.s32 64, 64
      %62 = vsyncadd [#allocation4], %s61
      %s64 = sshll.u32 [#allocation7], 4
      %s65 = int_to_ptr.vmem [resolvable:$true] %s64
      %67 = dma.vmem_to_hbm [thread:$0]  %s65, 64, %s2, [#allocation4]
    $region21: #{tpu_custom_call.1} parent=1 // pred_fallthru
      _
    // Predicated region
    $region22: #{tpu_custom_call.1} parent=1 // pred_check
      _
    $region23: #{tpu_custom_call.1} parent=1 // pred_check_branch
      %69 = sbr.rel (0) target = $region25
    $region24: #{tpu_custom_call.1} parent=1 // pred_region
      %70 = dma.done [#allocation4], 64
    $region25: #{tpu_custom_call.1} parent=1 // pred_fallthru
      _
    %71 = vsyncpa [#allocation3], 1
    %72 = vsyncpa [#allocation6], 1
    %73 = vsyncpa [#allocation4], 1

</llo_original>
